<compile_context>
chip_gen: v5e
topology: v5e:2x2
jax: 0.10.0
libtpu: 0.0.40
codegen_flags: <defaults>
</compile_context>

<pallas_src>
import functools

import jax
import jax.numpy as jnp
from jax.experimental import pallas as pl
from jax.experimental.pallas import tpu as pltpu

LANE = 128


def _round_up(n, m):
    return ((n + m - 1) // m) * m


def _pad2(a, rows, cols):
    return jnp.pad(a, ((0, rows - a.shape[0]), (0, cols - a.shape[1])))


# ----------------------------- Pallas kernel -----------------------------

def vae_fwd_kernel(
    x_ref, eps_ref,
    we1_ref, be1_ref, we2_ref, be2_ref, we3_ref, be3_ref,
    wml_ref, bml_ref,
    wd1_ref, bd1_ref, wd2_ref, bd2_ref, wd3_ref, bd3_ref,
    xhat_ref, mu_ref, logvar_ref,
):
    def dense(h_bf16, w_ref, b_ref):
        # bf16 x bf16 matmul on the MXU, f32 accumulation, f32 bias add.
        return (jnp.dot(h_bf16, w_ref[...], preferred_element_type=jnp.float32)
                + b_ref[...])

    x = x_ref[...]  # already bf16 from the wrapper

    # ---- encoder: (dropout=id) Linear -> Tanh  x3
    h = jnp.tanh(dense(x, we1_ref, be1_ref)).astype(jnp.bfloat16)
    h = jnp.tanh(dense(h, we2_ref, be2_ref)).astype(jnp.bfloat16)
    h = jnp.tanh(dense(h, we3_ref, be3_ref)).astype(jnp.bfloat16)

    # ---- fused mu/logvar head: one N = 2*d_z matmul, split at lane boundary
    d_z = mu_ref.shape[-1]                   # multiple of 128 -> aligned split
    ml = dense(h, wml_ref, bml_ref)          # [tile_b, 2*d_z], f32
    mu = ml[:, :d_z]
    logvar = ml[:, d_z:]
    mu_ref[...] = mu
    logvar_ref[...] = logvar

    # ---- reparameterize (f32): z = mu + eps * exp(0.5 * logvar)
    std = jnp.exp(0.5 * logvar)
    z = (mu + eps_ref[...] * std).astype(jnp.bfloat16)

    # ---- decoder: Linear -> Tanh, Linear -> Tanh, Linear
    h = jnp.tanh(dense(z, wd1_ref, bd1_ref)).astype(jnp.bfloat16)
    h = jnp.tanh(dense(h, wd2_ref, bd2_ref)).astype(jnp.bfloat16)
    xhat_ref[...] = dense(h, wd3_ref, bd3_ref).astype(xhat_ref.dtype)


# ------------------------------ JAX wrapper ------------------------------

def _resident_spec(shape):
    """Weight/bias BlockSpec: constant block, single-buffered if supported."""
    buffered = getattr(pl, "Buffered", None)
    if buffered is not None:
        try:
            return pl.BlockSpec(shape, lambda i: (0, 0),
                                pipeline_mode=buffered(buffer_count=1))
        except TypeError:
            pass  # older jax: fall back to default pipelining
    return pl.BlockSpec(shape, lambda i: (0, 0))


@functools.partial(jax.jit, static_argnames=("latent_dim",))
def vae_forward(x, eps, params, *, latent_dim):
    (we1, be1, we2, be2, we3, be3, we4, be4,
     wd1, bd1, wd2, bd2, wd3, bd3) = params

    batch, input_dim = x.shape
    hidden_dim = we1.shape[1]

    # padded (lane-dense) feature dims
    d_in = _round_up(input_dim, LANE)
    d_h = _round_up(hidden_dim, LANE)
    d_z = _round_up(latent_dim, LANE)

    # batch tiling: sublane-aligned, up to 256 rows per tile (MXU-friendly),
    # rounded so there is never a ragged remainder tile.
    b_pad = _round_up(batch, 8)
    tile_b = min(256, b_pad)
    b_pad = _round_up(b_pad, tile_b)
    grid = (b_pad // tile_b,)

    # fused mu/logvar head: pad each half to d_z lanes, concat -> [d_h, 2*d_z]
    w_mu, w_lv = we4[:, :latent_dim], we4[:, latent_dim:]
    b_mu, b_lv = be4[:, :latent_dim], be4[:, latent_dim:]
    wml = jnp.concatenate([_pad2(w_mu, hidden_dim, d_z),
                           _pad2(w_lv, hidden_dim, d_z)], axis=1)
    bml = jnp.concatenate([_pad2(b_mu, 1, d_z), _pad2(b_lv, 1, d_z)], axis=1)

    def pw(w, r, c):  # weights: pad + bf16
        return _pad2(w, r, c).astype(jnp.bfloat16)

    def pb(b, c):     # biases: pad, keep f32
        return _pad2(b, 1, c).astype(jnp.float32)

    padded_params = (
        pw(we1, d_in, d_h), pb(be1, d_h),
        pw(we2, d_h, d_h), pb(be2, d_h),
        pw(we3, d_h, d_h), pb(be3, d_h),
        pw(wml, d_h, 2 * d_z), pb(bml, 2 * d_z),
        pw(wd1, d_z, d_h), pb(bd1, d_h),
        pw(wd2, d_h, d_h), pb(bd2, d_h),
        pw(wd3, d_h, d_in), pb(bd3, d_in),
    )

    x_p = _pad2(x, b_pad, d_in).astype(jnp.bfloat16)
    eps_p = _pad2(eps, b_pad, d_z).astype(jnp.float32)

    # Block specs: x/eps/outputs tiled over batch; weights/biases resident.
    x_spec = pl.BlockSpec((tile_b, d_in), lambda i: (i, 0))
    eps_spec = pl.BlockSpec((tile_b, d_z), lambda i: (i, 0))
    param_specs = [_resident_spec(a.shape) for a in padded_params]

    out_shapes = (
        jax.ShapeDtypeStruct((b_pad, d_in), jnp.bfloat16),  # x_hat (padded)
        jax.ShapeDtypeStruct((b_pad, d_z), jnp.float32),    # mu     (padded)
        jax.ShapeDtypeStruct((b_pad, d_z), jnp.float32),    # logvar (padded)
    )
    out_specs = (
        pl.BlockSpec((tile_b, d_in), lambda i: (i, 0)),
        pl.BlockSpec((tile_b, d_z), lambda i: (i, 0)),
        pl.BlockSpec((tile_b, d_z), lambda i: (i, 0)),
    )

    # ---- VMEM budget (Buffered(1) weights x1, streamed tiles x2, headroom)
    w_elems = (d_in * d_h + 2 * d_h * d_h + d_h * 2 * d_z
               + d_z * d_h + d_h * d_h + d_h * d_in)
    b_elems = 5 * d_h + 2 * d_z + d_in
    resident_bytes = 2 * w_elems + 4 * b_elems
    stream_bytes = 2 * (tile_b * d_in * 2 + tile_b * d_z * 4        # x, eps
                        + tile_b * d_in * 2 + 2 * tile_b * d_z * 4)  # outputs
    act_bytes = 8 * tile_b * max(d_h, d_in, 2 * d_z) * 4             # f32 temps
    vmem_limit = int(1.5 * (resident_bytes + stream_bytes + act_bytes)) + (2 << 20)
    vmem_limit = max(32 << 20, min(vmem_limit, 64 << 20))

    # ---- cost hint for XLA scheduling around the custom call
    flops = 2 * b_pad * (d_in * d_h + 3 * d_h * d_h + d_h * 2 * d_z
                         + d_z * d_h + d_h * d_in)
    transcendentals = b_pad * (5 * d_h + d_z)  # 5 tanh layers + exp
    bytes_accessed = (resident_bytes
                      + 2 * b_pad * d_in + 4 * b_pad * d_z           # x, eps
                      + 2 * b_pad * d_in + 2 * 4 * b_pad * d_z)      # outputs

    # Tiny grids: keep all work on one core so the resident weights are only
    # fetched once (v7x has 2 TCs that would each DMA the full weight set).
    dim_sem = ("arbitrary",) if grid[0] <= 2 else ("parallel",)

    xhat_p, mu_p, lv_p = pl.pallas_call(
        vae_fwd_kernel,
        out_shape=out_shapes,
        grid_spec=pltpu.PrefetchScalarGridSpec(
            num_scalar_prefetch=0,
            grid=grid,
            in_specs=[x_spec, eps_spec] + param_specs,
            out_specs=out_specs,
        ),
        compiler_params=pltpu.CompilerParams(
            dimension_semantics=dim_sem,
            vmem_limit_bytes=vmem_limit,
        ),
        cost_estimate=pl.CostEstimate(
            flops=int(flops),
            transcendentals=int(transcendentals),
            bytes_accessed=int(bytes_accessed),
        ),
    )(x_p, eps_p, *padded_params)

    return (xhat_p[:batch, :input_dim],
            mu_p[:batch, :latent_dim],
            lv_p[:batch, :latent_dim])


def init_params(key, latent_dim, input_dim, hidden_dim):
    """Deterministic Linear params; weights stored as [in, out]."""
    dims = [
        # encoder
        (input_dim, hidden_dim),
        (hidden_dim, hidden_dim),
        (hidden_dim, hidden_dim),
        (hidden_dim, 2 * latent_dim),
        # decoder
        (latent_dim, hidden_dim),
        (hidden_dim, hidden_dim),
        (hidden_dim, input_dim),
    ]
    params = []
    for (fan_in, fan_out) in dims:
        key, kw, kb = jax.random.split(key, 3)
        bound = 1.0 / jnp.sqrt(fan_in)
        w = jax.random.uniform(kw, (fan_in, fan_out), jnp.float32, -bound, bound)
        b = jax.random.uniform(kb, (1, fan_out), jnp.float32, -bound, bound)
        params.extend([w, b])
    return tuple(params)


# ---------------------------------- main ----------------------------------

if __name__ == "__main__":
    latent_dim, input_dim, hidden_dim = 4, 16, 32
    batch = 8

    key = jax.random.PRNGKey(0)
    k_x, k_eps, k_params = jax.random.split(key, 3)

    x = jax.random.normal(k_x, (batch, input_dim), jnp.float32)
    eps = jax.random.normal(k_eps, (batch, latent_dim), jnp.float32)
    params = init_params(k_params, latent_dim, input_dim, hidden_dim)

    x_hat, mu, logvar = vae_forward(x, eps, params, latent_dim=latent_dim)
    jax.block_until_ready((x_hat, mu, logvar))

    # pure-JAX reference (same bf16-matmul / f32-accumulate math, same eps)
    def ref_forward(x, eps, p):
        (we1, be1, we2, be2, we3, be3, we4, be4,
         wd1, bd1, wd2, bd2, wd3, bd3) = p
        bf = jnp.bfloat16

        def dense(h, w, b):
            return jnp.dot(h.astype(bf), w.astype(bf),
                           preferred_element_type=jnp.float32) + b

        h = jnp.tanh(dense(x, we1, be1))
        h = jnp.tanh(dense(h, we2, be2))
        h = jnp.tanh(dense(h, we3, be3))
        ml = dense(h, we4, be4)
        mu_r, lv_r = ml[:, :latent_dim], ml[:, latent_dim:]
        z = mu_r + eps * jnp.exp(0.5 * lv_r)
        h = jnp.tanh(dense(z, wd1, bd1))
        h = jnp.tanh(dense(h, wd2, bd2))
        return dense(h, wd3, bd3), mu_r, lv_r

    xr, mr, lr = ref_forward(x, eps, params)
    # x_hat is emitted as bf16 by the kernel; compare against bf16-rounded ref.
    xr_bf = xr.astype(jnp.bfloat16).astype(jnp.float32)
    assert jnp.allclose(x_hat.astype(jnp.float32), xr_bf, atol=2e-2, rtol=2e-2)
    assert jnp.allclose(mu, mr, atol=1e-3, rtol=1e-3)
    assert jnp.allclose(logvar, lr, atol=1e-3, rtol=1e-3)

    print("KERNEL_OK")
</pallas_src>

<mosaic_0001>
module attributes {stable_mosaic.version = 11 : i64} {
  func.func @vae_fwd_kernel(%arg0: i32, %arg1: memref<8x128xbf16, #tpu.memory_space<vmem>>, %arg2: memref<8x128xf32, #tpu.memory_space<vmem>>, %arg3: memref<128x128xbf16, #tpu.memory_space<vmem>>, %arg4: memref<1x128xf32, #tpu.memory_space<vmem>>, %arg5: memref<128x128xbf16, #tpu.memory_space<vmem>>, %arg6: memref<1x128xf32, #tpu.memory_space<vmem>>, %arg7: memref<128x128xbf16, #tpu.memory_space<vmem>>, %arg8: memref<1x128xf32, #tpu.memory_space<vmem>>, %arg9: memref<128x256xbf16, #tpu.memory_space<vmem>>, %arg10: memref<1x256xf32, #tpu.memory_space<vmem>>, %arg11: memref<128x128xbf16, #tpu.memory_space<vmem>>, %arg12: memref<1x128xf32, #tpu.memory_space<vmem>>, %arg13: memref<128x128xbf16, #tpu.memory_space<vmem>>, %arg14: memref<1x128xf32, #tpu.memory_space<vmem>>, %arg15: memref<128x128xbf16, #tpu.memory_space<vmem>>, %arg16: memref<1x128xf32, #tpu.memory_space<vmem>>, %arg17: memref<8x128xbf16, #tpu.memory_space<vmem>>, %arg18: memref<8x128xf32, #tpu.memory_space<vmem>>, %arg19: memref<8x128xf32, #tpu.memory_space<vmem>>) attributes {dimension_semantics = [#tpu.dimension_semantics<arbitrary>], iteration_bounds = array<i64: 1>, scalar_prefetch = 0 : i64, scratch_operands = 0 : i64, tpu.core_type = #tpu.core_type<tc>, window_params = [{transform_indices = @transform_0, window_bounds = array<i64: 8, 128>}, {transform_indices = @transform_1, window_bounds = array<i64: 8, 128>}, {pipeline_mode = #tpu.pipeline_mode<synchronous>, transform_indices = @transform_2, window_bounds = array<i64: 128, 128>}, {pipeline_mode = #tpu.pipeline_mode<synchronous>, transform_indices = @transform_3, window_bounds = array<i64: 1, 128>}, {pipeline_mode = #tpu.pipeline_mode<synchronous>, transform_indices = @transform_4, window_bounds = array<i64: 128, 128>}, {pipeline_mode = #tpu.pipeline_mode<synchronous>, transform_indices = @transform_5, window_bounds = array<i64: 1, 128>}, {pipeline_mode = #tpu.pipeline_mode<synchronous>, transform_indices = @transform_6, window_bounds = array<i64: 128, 128>}, {pipeline_mode = #tpu.pipeline_mode<synchronous>, transform_indices = @transform_7, window_bounds = array<i64: 1, 128>}, {pipeline_mode = #tpu.pipeline_mode<synchronous>, transform_indices = @transform_8, window_bounds = array<i64: 128, 256>}, {pipeline_mode = #tpu.pipeline_mode<synchronous>, transform_indices = @transform_9, window_bounds = array<i64: 1, 256>}, {pipeline_mode = #tpu.pipeline_mode<synchronous>, transform_indices = @transform_10, window_bounds = array<i64: 128, 128>}, {pipeline_mode = #tpu.pipeline_mode<synchronous>, transform_indices = @transform_11, window_bounds = array<i64: 1, 128>}, {pipeline_mode = #tpu.pipeline_mode<synchronous>, transform_indices = @transform_12, window_bounds = array<i64: 128, 128>}, {pipeline_mode = #tpu.pipeline_mode<synchronous>, transform_indices = @transform_13, window_bounds = array<i64: 1, 128>}, {pipeline_mode = #tpu.pipeline_mode<synchronous>, transform_indices = @transform_14, window_bounds = array<i64: 128, 128>}, {pipeline_mode = #tpu.pipeline_mode<synchronous>, transform_indices = @transform_15, window_bounds = array<i64: 1, 128>}, {transform_indices = @transform_16, window_bounds = array<i64: 8, 128>}, {transform_indices = @transform_17, window_bounds = array<i64: 8, 128>}, {transform_indices = @transform_18, window_bounds = array<i64: 8, 128>}]} {
    %c0 = arith.constant 0 : index
    %c0_0 = arith.constant 0 : index
    %0 = vector.load %arg1[%c0, %c0_0] : memref<8x128xbf16, #tpu.memory_space<vmem>>, vector<8x128xbf16>
    %c0_1 = arith.constant 0 : index
    %c0_2 = arith.constant 0 : index
    %1 = vector.load %arg3[%c0_1, %c0_2] : memref<128x128xbf16, #tpu.memory_space<vmem>>, vector<128x128xbf16>
    %cst = arith.constant dense<0.000000e+00> : vector<8x128xf32>
    %2 = tpu.matmul %0, %1, %cst {dimension_numbers = #tpu.dot_dimension_numbers<[1], [0], [0], [1], [0, 0, 1, 1], [], []>} : vector<8x128xbf16>, vector<128x128xbf16>, vector<8x128xf32> -> vector<8x128xf32>
    %c0_3 = arith.constant 0 : index
    %c0_4 = arith.constant 0 : index
    %3 = vector.load %arg4[%c0_3, %c0_4] : memref<1x128xf32, #tpu.memory_space<vmem>>, vector<1x128xf32>
    %4 = vector.broadcast %3 : vector<1x128xf32> to vector<8x128xf32>
    %5 = arith.addf %2, %4 : vector<8x128xf32>
    %6 = math.tanh %5 : vector<8x128xf32>
    %7 = arith.truncf %6 : vector<8x128xf32> to vector<8x128xbf16>
    %c0_5 = arith.constant 0 : index
    %c0_6 = arith.constant 0 : index
    %8 = vector.load %arg5[%c0_5, %c0_6] : memref<128x128xbf16, #tpu.memory_space<vmem>>, vector<128x128xbf16>
    %cst_7 = arith.constant dense<0.000000e+00> : vector<8x128xf32>
    %9 = tpu.matmul %7, %8, %cst_7 {dimension_numbers = #tpu.dot_dimension_numbers<[1], [0], [0], [1], [0, 0, 1, 1], [], []>} : vector<8x128xbf16>, vector<128x128xbf16>, vector<8x128xf32> -> vector<8x128xf32>
    %c0_8 = arith.constant 0 : index
    %c0_9 = arith.constant 0 : index
    %10 = vector.load %arg6[%c0_8, %c0_9] : memref<1x128xf32, #tpu.memory_space<vmem>>, vector<1x128xf32>
    %11 = vector.broadcast %10 : vector<1x128xf32> to vector<8x128xf32>
    %12 = arith.addf %9, %11 : vector<8x128xf32>
    %13 = math.tanh %12 : vector<8x128xf32>
    %14 = arith.truncf %13 : vector<8x128xf32> to vector<8x128xbf16>
    %c0_10 = arith.constant 0 : index
    %c0_11 = arith.constant 0 : index
    %15 = vector.load %arg7[%c0_10, %c0_11] : memref<128x128xbf16, #tpu.memory_space<vmem>>, vector<128x128xbf16>
    %cst_12 = arith.constant dense<0.000000e+00> : vector<8x128xf32>
    %16 = tpu.matmul %14, %15, %cst_12 {dimension_numbers = #tpu.dot_dimension_numbers<[1], [0], [0], [1], [0, 0, 1, 1], [], []>} : vector<8x128xbf16>, vector<128x128xbf16>, vector<8x128xf32> -> vector<8x128xf32>
    %c0_13 = arith.constant 0 : index
    %c0_14 = arith.constant 0 : index
    %17 = vector.load %arg8[%c0_13, %c0_14] : memref<1x128xf32, #tpu.memory_space<vmem>>, vector<1x128xf32>
    %18 = vector.broadcast %17 : vector<1x128xf32> to vector<8x128xf32>
    %19 = arith.addf %16, %18 : vector<8x128xf32>
    %20 = math.tanh %19 : vector<8x128xf32>
    %21 = arith.truncf %20 : vector<8x128xf32> to vector<8x128xbf16>
    %c0_15 = arith.constant 0 : index
    %c0_16 = arith.constant 0 : index
    %22 = vector.load %arg9[%c0_15, %c0_16] : memref<128x256xbf16, #tpu.memory_space<vmem>>, vector<128x256xbf16>
    %cst_17 = arith.constant dense<0.000000e+00> : vector<8x256xf32>
    %23 = tpu.matmul %21, %22, %cst_17 {dimension_numbers = #tpu.dot_dimension_numbers<[1], [0], [0], [1], [0, 0, 1, 1], [], []>} : vector<8x128xbf16>, vector<128x256xbf16>, vector<8x256xf32> -> vector<8x256xf32>
    %c0_18 = arith.constant 0 : index
    %c0_19 = arith.constant 0 : index
    %24 = vector.load %arg10[%c0_18, %c0_19] : memref<1x256xf32, #tpu.memory_space<vmem>>, vector<1x256xf32>
    %25 = vector.broadcast %24 : vector<1x256xf32> to vector<8x256xf32>
    %26 = arith.addf %23, %25 : vector<8x256xf32>
    %27 = vector.extract_strided_slice %26 {offsets = [0, 0], sizes = [8, 128], strides = [1, 1]} : vector<8x256xf32> to vector<8x128xf32>
    %28 = vector.extract_strided_slice %26 {offsets = [0, 128], sizes = [8, 128], strides = [1, 1]} : vector<8x256xf32> to vector<8x128xf32>
    %c0_20 = arith.constant 0 : index
    %c0_21 = arith.constant 0 : index
    %29 = vector.load %arg18[%c0_20, %c0_21] : memref<8x128xf32, #tpu.memory_space<vmem>>, vector<8x128xf32>
    tpu.vector_store %arg18[%c0_20, %c0_21], %27 {strides = array<i32>} : memref<8x128xf32, #tpu.memory_space<vmem>>, vector<8x128xf32>,
    %c0_22 = arith.constant 0 : index
    %c0_23 = arith.constant 0 : index
    %30 = vector.load %arg19[%c0_22, %c0_23] : memref<8x128xf32, #tpu.memory_space<vmem>>, vector<8x128xf32>
    tpu.vector_store %arg19[%c0_22, %c0_23], %28 {strides = array<i32>} : memref<8x128xf32, #tpu.memory_space<vmem>>, vector<8x128xf32>,
    %cst_24 = arith.constant 5.000000e-01 : f32
    %31 = vector.broadcast %cst_24 : f32 to vector<8x128xf32>
    %32 = arith.mulf %31, %28 : vector<8x128xf32>
    %33 = math.exp %32 : vector<8x128xf32>
    %c0_25 = arith.constant 0 : index
    %c0_26 = arith.constant 0 : index
    %34 = vector.load %arg2[%c0_25, %c0_26] : memref<8x128xf32, #tpu.memory_space<vmem>>, vector<8x128xf32>
    %35 = arith.mulf %34, %33 : vector<8x128xf32>
    %36 = arith.addf %27, %35 : vector<8x128xf32>
    %37 = arith.truncf %36 : vector<8x128xf32> to vector<8x128xbf16>
    %c0_27 = arith.constant 0 : index
    %c0_28 = arith.constant 0 : index
    %38 = vector.load %arg11[%c0_27, %c0_28] : memref<128x128xbf16, #tpu.memory_space<vmem>>, vector<128x128xbf16>
    %cst_29 = arith.constant dense<0.000000e+00> : vector<8x128xf32>
    %39 = tpu.matmul %37, %38, %cst_29 {dimension_numbers = #tpu.dot_dimension_numbers<[1], [0], [0], [1], [0, 0, 1, 1], [], []>} : vector<8x128xbf16>, vector<128x128xbf16>, vector<8x128xf32> -> vector<8x128xf32>
    %c0_30 = arith.constant 0 : index
    %c0_31 = arith.constant 0 : index
    %40 = vector.load %arg12[%c0_30, %c0_31] : memref<1x128xf32, #tpu.memory_space<vmem>>, vector<1x128xf32>
    %41 = vector.broadcast %40 : vector<1x128xf32> to vector<8x128xf32>
    %42 = arith.addf %39, %41 : vector<8x128xf32>
    %43 = math.tanh %42 : vector<8x128xf32>
    %44 = arith.truncf %43 : vector<8x128xf32> to vector<8x128xbf16>
    %c0_32 = arith.constant 0 : index
    %c0_33 = arith.constant 0 : index
    %45 = vector.load %arg13[%c0_32, %c0_33] : memref<128x128xbf16, #tpu.memory_space<vmem>>, vector<128x128xbf16>
    %cst_34 = arith.constant dense<0.000000e+00> : vector<8x128xf32>
    %46 = tpu.matmul %44, %45, %cst_34 {dimension_numbers = #tpu.dot_dimension_numbers<[1], [0], [0], [1], [0, 0, 1, 1], [], []>} : vector<8x128xbf16>, vector<128x128xbf16>, vector<8x128xf32> -> vector<8x128xf32>
    %c0_35 = arith.constant 0 : index
    %c0_36 = arith.constant 0 : index
    %47 = vector.load %arg14[%c0_35, %c0_36] : memref<1x128xf32, #tpu.memory_space<vmem>>, vector<1x128xf32>
    %48 = vector.broadcast %47 : vector<1x128xf32> to vector<8x128xf32>
    %49 = arith.addf %46, %48 : vector<8x128xf32>
    %50 = math.tanh %49 : vector<8x128xf32>
    %51 = arith.truncf %50 : vector<8x128xf32> to vector<8x128xbf16>
    %c0_37 = arith.constant 0 : index
    %c0_38 = arith.constant 0 : index
    %52 = vector.load %arg15[%c0_37, %c0_38] : memref<128x128xbf16, #tpu.memory_space<vmem>>, vector<128x128xbf16>
    %cst_39 = arith.constant dense<0.000000e+00> : vector<8x128xf32>
    %53 = tpu.matmul %51, %52, %cst_39 {dimension_numbers = #tpu.dot_dimension_numbers<[1], [0], [0], [1], [0, 0, 1, 1], [], []>} : vector<8x128xbf16>, vector<128x128xbf16>, vector<8x128xf32> -> vector<8x128xf32>
    %c0_40 = arith.constant 0 : index
    %c0_41 = arith.constant 0 : index
    %54 = vector.load %arg16[%c0_40, %c0_41] : memref<1x128xf32, #tpu.memory_space<vmem>>, vector<1x128xf32>
    %55 = vector.broadcast %54 : vector<1x128xf32> to vector<8x128xf32>
    %56 = arith.addf %53, %55 : vector<8x128xf32>
    %57 = arith.truncf %56 : vector<8x128xf32> to vector<8x128xbf16>
    %c0_42 = arith.constant 0 : index
    %c0_43 = arith.constant 0 : index
    %58 = vector.load %arg17[%c0_42, %c0_43] : memref<8x128xbf16, #tpu.memory_space<vmem>>, vector<8x128xbf16>
    tpu.vector_store %arg17[%c0_42, %c0_43], %57 {strides = array<i32>} : memref<8x128xbf16, #tpu.memory_space<vmem>>, vector<8x128xbf16>,
    return
  }
  func.func @transform_0(%arg0: i32) -> (i32, i32) {
    %c0_i32 = arith.constant 0 : i32
    %c0_i32_0 = arith.constant 0 : i32
    return %arg0, %c0_i32 : i32, i32
  }
  func.func @transform_1(%arg0: i32) -> (i32, i32) {
    %c0_i32 = arith.constant 0 : i32
    %c0_i32_0 = arith.constant 0 : i32
    return %arg0, %c0_i32 : i32, i32
  }
  func.func @transform_2(%arg0: i32) -> (i32, i32) {
    %c0_i32 = arith.constant 0 : i32
    %c0_i32_0 = arith.constant 0 : i32
    %c0_i32_1 = arith.constant 0 : i32
    return %c0_i32, %c0_i32_0 : i32, i32
  }
  func.func @transform_3(%arg0: i32) -> (i32, i32) {
    %c0_i32 = arith.constant 0 : i32
    %c0_i32_0 = arith.constant 0 : i32
    %c0_i32_1 = arith.constant 0 : i32
    return %c0_i32, %c0_i32_0 : i32, i32
  }
  func.func @transform_4(%arg0: i32) -> (i32, i32) {
    %c0_i32 = arith.constant 0 : i32
    %c0_i32_0 = arith.constant 0 : i32
    %c0_i32_1 = arith.constant 0 : i32
    return %c0_i32, %c0_i32_0 : i32, i32
  }
  func.func @transform_5(%arg0: i32) -> (i32, i32) {
    %c0_i32 = arith.constant 0 : i32
    %c0_i32_0 = arith.constant 0 : i32
    %c0_i32_1 = arith.constant 0 : i32
    return %c0_i32, %c0_i32_0 : i32, i32
  }
  func.func @transform_6(%arg0: i32) -> (i32, i32) {
    %c0_i32 = arith.constant 0 : i32
    %c0_i32_0 = arith.constant 0 : i32
    %c0_i32_1 = arith.constant 0 : i32
    return %c0_i32, %c0_i32_0 : i32, i32
  }
  func.func @transform_7(%arg0: i32) -> (i32, i32) {
    %c0_i32 = arith.constant 0 : i32
    %c0_i32_0 = arith.constant 0 : i32
    %c0_i32_1 = arith.constant 0 : i32
    return %c0_i32, %c0_i32_0 : i32, i32
  }
  func.func @transform_8(%arg0: i32) -> (i32, i32) {
    %c0_i32 = arith.constant 0 : i32
    %c0_i32_0 = arith.constant 0 : i32
    %c0_i32_1 = arith.constant 0 : i32
    return %c0_i32, %c0_i32_0 : i32, i32
  }
  func.func @transform_9(%arg0: i32) -> (i32, i32) {
    %c0_i32 = arith.constant 0 : i32
    %c0_i32_0 = arith.constant 0 : i32
    %c0_i32_1 = arith.constant 0 : i32
    return %c0_i32, %c0_i32_0 : i32, i32
  }
  func.func @transform_10(%arg0: i32) -> (i32, i32) {
    %c0_i32 = arith.constant 0 : i32
    %c0_i32_0 = arith.constant 0 : i32
    %c0_i32_1 = arith.constant 0 : i32
    return %c0_i32, %c0_i32_0 : i32, i32
  }
  func.func @transform_11(%arg0: i32) -> (i32, i32) {
    %c0_i32 = arith.constant 0 : i32
    %c0_i32_0 = arith.constant 0 : i32
    %c0_i32_1 = arith.constant 0 : i32
    return %c0_i32, %c0_i32_0 : i32, i32
  }
  func.func @transform_12(%arg0: i32) -> (i32, i32) {
    %c0_i32 = arith.constant 0 : i32
    %c0_i32_0 = arith.constant 0 : i32
    %c0_i32_1 = arith.constant 0 : i32
    return %c0_i32, %c0_i32_0 : i32, i32
  }
  func.func @transform_13(%arg0: i32) -> (i32, i32) {
    %c0_i32 = arith.constant 0 : i32
    %c0_i32_0 = arith.constant 0 : i32
    %c0_i32_1 = arith.constant 0 : i32
    return %c0_i32, %c0_i32_0 : i32, i32
  }
  func.func @transform_14(%arg0: i32) -> (i32, i32) {
    %c0_i32 = arith.constant 0 : i32
    %c0_i32_0 = arith.constant 0 : i32
    %c0_i32_1 = arith.constant 0 : i32
    return %c0_i32, %c0_i32_0 : i32, i32
  }
  func.func @transform_15(%arg0: i32) -> (i32, i32) {
    %c0_i32 = arith.constant 0 : i32
    %c0_i32_0 = arith.constant 0 : i32
    %c0_i32_1 = arith.constant 0 : i32
    return %c0_i32, %c0_i32_0 : i32, i32
  }
  func.func @transform_16(%arg0: i32) -> (i32, i32) {
    %c0_i32 = arith.constant 0 : i32
    %c0_i32_0 = arith.constant 0 : i32
    return %arg0, %c0_i32 : i32, i32
  }
  func.func @transform_17(%arg0: i32) -> (i32, i32) {
    %c0_i32 = arith.constant 0 : i32
    %c0_i32_0 = arith.constant 0 : i32
    return %arg0, %c0_i32 : i32, i32
  }
  func.func @transform_18(%arg0: i32) -> (i32, i32) {
    %c0_i32 = arith.constant 0 : i32
    %c0_i32_0 = arith.constant 0 : i32
    return %arg0, %c0_i32 : i32, i32
  }
}

</mosaic_0001>

<llo_original>
// kernel: vae_forward.1
$region0: #{vae_forward.1}
  #allocation0 [shape = 'u32[]', space=smem, size = 0x4, offset = 0x4, fixed_abs, tag = 'smem constant byte address 0x4 - core index']
  #allocation1 [shape = 'u32[72,128]{1,0:T(1,128)}', space=vmem, size = 0x9000, scoped, tag = 'internal scratch']
  %s0 = inlined_call_operand.vmem [shape: bf16[8,128], index: 0, kind: input, shape index: {}]
  %s1 = inlined_call_operand.vmem [shape: f32[8,128], index: 1, kind: input, shape index: {}]
  %s2 = inlined_call_operand.vmem [shape: bf16[128,128], index: 2, kind: input, shape index: {}]
  %s3 = inlined_call_operand.vmem [shape: f32[1,128], index: 3, kind: input, shape index: {}]
  %s4 = inlined_call_operand.vmem [shape: bf16[128,128], index: 4, kind: input, shape index: {}]
  %s5 = inlined_call_operand.vmem [shape: f32[1,128], index: 5, kind: input, shape index: {}]
  %s6 = inlined_call_operand.vmem [shape: bf16[128,128], index: 6, kind: input, shape index: {}]
  %s7 = inlined_call_operand.vmem [shape: f32[1,128], index: 7, kind: input, shape index: {}]
  %s8 = inlined_call_operand.vmem [shape: bf16[128,256], index: 8, kind: input, shape index: {}]
  %s9 = inlined_call_operand.vmem [shape: f32[1,256], index: 9, kind: input, shape index: {}]
  %s10 = inlined_call_operand.vmem [shape: bf16[128,128], index: 10, kind: input, shape index: {}]
  %s11 = inlined_call_operand.vmem [shape: f32[1,128], index: 11, kind: input, shape index: {}]
  %s12 = inlined_call_operand.vmem [shape: bf16[128,128], index: 12, kind: input, shape index: {}]
  %s13 = inlined_call_operand.vmem [shape: f32[1,128], index: 13, kind: input, shape index: {}]
  %s14 = inlined_call_operand.vmem [shape: bf16[128,128], index: 14, kind: input, shape index: {}]
  %s15 = inlined_call_operand.vmem [shape: f32[1,128], index: 15, kind: input, shape index: {}]
  %s16 = inlined_call_operand.hbm [shape: bf16[8,128], index: 16, kind: output, shape index: {0}]
  %s17 = inlined_call_operand.vmem [shape: f32[8,128], index: 17, kind: output, shape index: {1}]
  %s18 = inlined_call_operand.vmem [shape: f32[8,128], index: 18, kind: output, shape index: {2}]
  %19 = xla_tuple %s16, %s17, %s18
  %s20 = sld [smem:[#allocation0]]
  $region90: #{vae_forward.1} parent=0
    _
  %s22 = ssub.s32 1, %s20
  %s23 = scalar_select 0, %s22, %s20
  $region1: #{vae_forward.1} parent=0
    #allocation2 [shape = 'u8[2048]{0}', space=vmem, size = 0x800, scoped, tag = 'output window, operand 0, single buffered']
    #allocation3 [shape = 's32[1]{0}', space=sflag, size = 0x4, scoped, tag = 'scoped memory for vae_forward.1']
    %24 = vsyncpa [#allocation3], 0
    // Predicated region
    $region2: #{vae_forward.1} parent=1 // pred_check
      _
    $region3: #{vae_forward.1} parent=1 // pred_check_branch
      %26 = sbr.rel (0) target = $region5
    $region4: #{vae_forward.1} parent=1 // pred_region
      _
    $region5: #{vae_forward.1} parent=1 // pred_fallthru
      _
    // Predicated region
    $region6: #{vae_forward.1} parent=1 // pred_check
      _
    $region7: #{vae_forward.1} parent=1 // pred_check_branch
      %28 = sbr.rel (0) target = $region9
    $region8: #{vae_forward.1} parent=1 // pred_region
      _
    $region9: #{vae_forward.1} parent=1 // pred_fallthru
      _
    // Predicated region
    $region10: #{vae_forward.1} parent=1 // pred_check
      _
    $region11: #{vae_forward.1} parent=1 // pred_check_branch
      %30 = sbr.rel (0) target = $region13
    $region12: #{vae_forward.1} parent=1 // pred_region
      _
    $region13: #{vae_forward.1} parent=1 // pred_fallthru
      _
    // Predicated region
    $region14: #{vae_forward.1} parent=1 // pred_check
      _
    $region15: #{vae_forward.1} parent=1 // pred_check_branch
      %32 = sbr.rel (0) target = $region17
    $region16: #{vae_forward.1} parent=1 // pred_region
      _
    $region17: #{vae_forward.1} parent=1 // pred_fallthru
      _
    // Predicated region
    $region18: #{vae_forward.1} parent=1 // pred_check
      _
    $region19: #{vae_forward.1} parent=1 // pred_check_branch
      %34 = sbr.rel (0) target = $region21
    $region20: #{vae_forward.1} parent=1 // pred_region
      _
    $region21: #{vae_forward.1} parent=1 // pred_fallthru
      _
    // Predicated region
    $region22: #{vae_forward.1} parent=1 // pred_check
      _
    $region23: #{vae_forward.1} parent=1 // pred_check_branch
      %36 = sbr.rel (0) target = $region25
    $region24: #{vae_forward.1} parent=1 // pred_region
      _
    $region25: #{vae_forward.1} parent=1 // pred_fallthru
      _
    // Predicated region
    $region26: #{vae_forward.1} parent=1 // pred_check
      _
    $region27: #{vae_forward.1} parent=1 // pred_check_branch
      %38 = sbr.rel (0) target = $region29
    $region28: #{vae_forward.1} parent=1 // pred_region
      _
    $region29: #{vae_forward.1} parent=1 // pred_fallthru
      _
    // Predicated region
    $region30: #{vae_forward.1} parent=1 // pred_check
      _
    $region31: #{vae_forward.1} parent=1 // pred_check_branch
      %40 = sbr.rel (0) target = $region33
    $region32: #{vae_forward.1} parent=1 // pred_region
      _
    $region33: #{vae_forward.1} parent=1 // pred_fallthru
      _
    // Predicated region
    $region34: #{vae_forward.1} parent=1 // pred_check
      _
    $region35: #{vae_forward.1} parent=1 // pred_check_branch
      %42 = sbr.rel (0) target = $region37
    $region36: #{vae_forward.1} parent=1 // pred_region
      _
    $region37: #{vae_forward.1} parent=1 // pred_fallthru
      _
    // Predicated region
    $region38: #{vae_forward.1} parent=1 // pred_check
      _
    $region39: #{vae_forward.1} parent=1 // pred_check_branch
      %44 = sbr.rel (0) target = $region41
    $region40: #{vae_forward.1} parent=1 // pred_region
      _
    $region41: #{vae_forward.1} parent=1 // pred_fallthru
      _
    // Predicated region
    $region42: #{vae_forward.1} parent=1 // pred_check
      _
    $region43: #{vae_forward.1} parent=1 // pred_check_branch
      %46 = sbr.rel (0) target = $region45
    $region44: #{vae_forward.1} parent=1 // pred_region
      _
    $region45: #{vae_forward.1} parent=1 // pred_fallthru
      _
    // Predicated region
    $region46: #{vae_forward.1} parent=1 // pred_check
      _
    $region47: #{vae_forward.1} parent=1 // pred_check_branch
      %48 = sbr.rel (0) target = $region49
    $region48: #{vae_forward.1} parent=1 // pred_region
      _
    $region49: #{vae_forward.1} parent=1 // pred_fallthru
      _
    // Predicated region
    $region50: #{vae_forward.1} parent=1 // pred_check
      _
    $region51: #{vae_forward.1} parent=1 // pred_check_branch
      %50 = sbr.rel (0) target = $region53
    $region52: #{vae_forward.1} parent=1 // pred_region
      _
    $region53: #{vae_forward.1} parent=1 // pred_fallthru
      _
    // Predicated region
    $region54: #{vae_forward.1} parent=1 // pred_check
      _
    $region55: #{vae_forward.1} parent=1 // pred_check_branch
      %52 = sbr.rel (0) target = $region57
    $region56: #{vae_forward.1} parent=1 // pred_region
      _
    $region57: #{vae_forward.1} parent=1 // pred_fallthru
      _
    // Predicated region
    $region58: #{vae_forward.1} parent=1 // pred_check
      _
    $region59: #{vae_forward.1} parent=1 // pred_check_branch
      %54 = sbr.rel (0) target = $region61
    $region60: #{vae_forward.1} parent=1 // pred_region
      _
    $region61: #{vae_forward.1} parent=1 // pred_fallthru
      _
    // Predicated region
    $region62: #{vae_forward.1} parent=1 // pred_check
      _
    $region63: #{vae_forward.1} parent=1 // pred_check_branch
      %56 = sbr.rel (0) target = $region65
    $region64: #{vae_forward.1} parent=1 // pred_region
      _
    $region65: #{vae_forward.1} parent=1 // pred_fallthru
      _
    %v57 = vld [vmem:[%s0] sm:$0xf]
    %v58 = vld [vmem:[%s2] sm:$0xf]
    %v59 = vld [vmem:[%s2 + $0x4] sm:$0xf]
    %v60 = vld [vmem:[%s2 + $0x8] sm:$0xf]
    %v61 = vld [vmem:[%s2 + $0xc] sm:$0xf]
    %v62 = vld [vmem:[%s2 + $0x10] sm:$0xf]
    %v63 = vld [vmem:[%s2 + $0x14] sm:$0xf]
    %v64 = vld [vmem:[%s2 + $0x18] sm:$0xf]
    %v65 = vld [vmem:[%s2 + $0x1c] sm:$0xf]
    %v66 = vld [vmem:[%s2 + $0x20] sm:$0xf]
    %v67 = vld [vmem:[%s2 + $0x24] sm:$0xf]
    %v68 = vld [vmem:[%s2 + $0x28] sm:$0xf]
    %v69 = vld [vmem:[%s2 + $0x2c] sm:$0xf]
    %v70 = vld [vmem:[%s2 + $0x30] sm:$0xf]
    %v71 = vld [vmem:[%s2 + $0x34] sm:$0xf]
    %v72 = vld [vmem:[%s2 + $0x38] sm:$0xf]
    %v73 = vld [vmem:[%s2 + $0x3c] sm:$0xf]
    %v74 = vld [vmem:[%s3] sm:$0x1]
    %v76 = vperm.slane %v74, 0
    %v94 = vunpack.c.l.b16 %v58
    %v95 = vunpack.c.l.b16 %v59
    %v96 = vunpack.c.l.b16 %v60
    %v97 = vunpack.c.l.b16 %v61
    %v98 = vunpack.c.l.b16 %v62
    %v99 = vunpack.c.l.b16 %v63
    %v100 = vunpack.c.l.b16 %v64
    %v101 = vunpack.c.l.b16 %v65
    %v102 = vunpack.c.l.b16 %v66
    %v103 = vunpack.c.l.b16 %v67
    %v104 = vunpack.c.l.b16 %v68
    %v105 = vunpack.c.l.b16 %v69
    %v106 = vunpack.c.l.b16 %v70
    %v107 = vunpack.c.l.b16 %v71
    %v108 = vunpack.c.l.b16 %v72
    %v109 = vunpack.c.l.b16 %v73
    %v110 = vpack.c.b16 %v95, %v94
    %v111 = vpack.c.b16 %v97, %v96
    %v112 = vpack.c.b16 %v99, %v98
    %v113 = vpack.c.b16 %v101, %v100
    %v114 = vpack.c.b16 %v103, %v102
    %v115 = vpack.c.b16 %v105, %v104
    %v116 = vpack.c.b16 %v107, %v106
    %v117 = vpack.c.b16 %v109, %v108
    %126 = vmatpush.bf16.msra.mxu0 %v117
    %127 = vmatpush.bf16.msra.mxu0 %v116
    %128 = vmatpush.bf16.msra.mxu0 %v115
    %129 = vmatpush.bf16.msra.mxu0 %v114
    %130 = vmatpush.bf16.msra.mxu0 %v113
    %131 = vmatpush.bf16.msra.mxu0 %v112
    %132 = vmatpush.bf16.msra.mxu0 %v111
    %133 = vmatpush.bf16.msra.mxu0 %v110
    %134 = vmatmul.bf16.gmra.mxu0 %v57
    %v135 = vpop.f32.mrf.mxu0
    %v136 = vadd.f32 %v76, %v135
    %v137 = vpop.f32.mrf.mxu0
    %138 = vdwg.mxu0
    %v139 = vtanh.pop %v136
    %v140 = vpack.c.bf16 %v139, %v139
    %v141 = vld [vmem:[%s4] sm:$0xf]
    %v142 = vld [vmem:[%s4 + $0x4] sm:$0xf]
    %v143 = vld [vmem:[%s4 + $0x8] sm:$0xf]
    %v144 = vld [vmem:[%s4 + $0xc] sm:$0xf]
    %v145 = vld [vmem:[%s4 + $0x10] sm:$0xf]
    %v146 = vld [vmem:[%s4 + $0x14] sm:$0xf]
    %v147 = vld [vmem:[%s4 + $0x18] sm:$0xf]
    %v148 = vld [vmem:[%s4 + $0x1c] sm:$0xf]
    %v149 = vld [vmem:[%s4 + $0x20] sm:$0xf]
    %v150 = vld [vmem:[%s4 + $0x24] sm:$0xf]
    %v151 = vld [vmem:[%s4 + $0x28] sm:$0xf]
    %v152 = vld [vmem:[%s4 + $0x2c] sm:$0xf]
    %v153 = vld [vmem:[%s4 + $0x30] sm:$0xf]
    %v154 = vld [vmem:[%s4 + $0x34] sm:$0xf]
    %v155 = vld [vmem:[%s4 + $0x38] sm:$0xf]
    %v156 = vld [vmem:[%s4 + $0x3c] sm:$0xf]
    %v157 = vld [vmem:[%s5] sm:$0x1]
    %v159 = vperm.slane %v157, 0
    %v177 = vunpack.c.l.b16 %v141
    %v178 = vunpack.c.l.b16 %v142
    %v179 = vunpack.c.l.b16 %v143
    %v180 = vunpack.c.l.b16 %v144
    %v181 = vunpack.c.l.b16 %v145
    %v182 = vunpack.c.l.b16 %v146
    %v183 = vunpack.c.l.b16 %v147
    %v184 = vunpack.c.l.b16 %v148
    %v185 = vunpack.c.l.b16 %v149
    %v186 = vunpack.c.l.b16 %v150
    %v187 = vunpack.c.l.b16 %v151
    %v188 = vunpack.c.l.b16 %v152
    %v189 = vunpack.c.l.b16 %v153
    %v190 = vunpack.c.l.b16 %v154
    %v191 = vunpack.c.l.b16 %v155
    %v192 = vunpack.c.l.b16 %v156
    %v193 = vpack.c.b16 %v178, %v177
    %v194 = vpack.c.b16 %v180, %v179
    %v195 = vpack.c.b16 %v182, %v181
    %v196 = vpack.c.b16 %v184, %v183
    %v197 = vpack.c.b16 %v186, %v185
    %v198 = vpack.c.b16 %v188, %v187
    %v199 = vpack.c.b16 %v190, %v189
    %v200 = vpack.c.b16 %v192, %v191
    %209 = vmatpush.bf16.msra.mxu0 %v200
    %210 = vmatpush.bf16.msra.mxu0 %v199
    %211 = vmatpush.bf16.msra.mxu0 %v198
    %212 = vmatpush.bf16.msra.mxu0 %v197
    %213 = vmatpush.bf16.msra.mxu0 %v196
    %214 = vmatpush.bf16.msra.mxu0 %v195
    %215 = vmatpush.bf16.msra.mxu0 %v194
    %216 = vmatpush.bf16.msra.mxu0 %v193
    %217 = vmatmul.bf16.gmra.mxu0 %v140
    %v218 = vpop.f32.mrf.mxu0
    %v219 = vadd.f32 %v159, %v218
    %v220 = vpop.f32.mrf.mxu0
    %221 = vdwg.mxu0
    %v222 = vtanh.pop %v219
    %v223 = vpack.c.bf16 %v222, %v222
    %v224 = vld [vmem:[%s6] sm:$0xf]
    %v225 = vld [vmem:[%s6 + $0x4] sm:$0xf]
    %v226 = vld [vmem:[%s6 + $0x8] sm:$0xf]
    %v227 = vld [vmem:[%s6 + $0xc] sm:$0xf]
    %v228 = vld [vmem:[%s6 + $0x10] sm:$0xf]
    %v229 = vld [vmem:[%s6 + $0x14] sm:$0xf]
    %v230 = vld [vmem:[%s6 + $0x18] sm:$0xf]
    %v231 = vld [vmem:[%s6 + $0x1c] sm:$0xf]
    %v232 = vld [vmem:[%s6 + $0x20] sm:$0xf]
    %v233 = vld [vmem:[%s6 + $0x24] sm:$0xf]
    %v234 = vld [vmem:[%s6 + $0x28] sm:$0xf]
    %v235 = vld [vmem:[%s6 + $0x2c] sm:$0xf]
    %v236 = vld [vmem:[%s6 + $0x30] sm:$0xf]
    %v237 = vld [vmem:[%s6 + $0x34] sm:$0xf]
    %v238 = vld [vmem:[%s6 + $0x38] sm:$0xf]
    %v239 = vld [vmem:[%s6 + $0x3c] sm:$0xf]
    %v240 = vld [vmem:[%s7] sm:$0x1]
    %v242 = vperm.slane %v240, 0
    %v260 = vunpack.c.l.b16 %v224
    %v261 = vunpack.c.l.b16 %v225
    %v262 = vunpack.c.l.b16 %v226
    %v263 = vunpack.c.l.b16 %v227
    %v264 = vunpack.c.l.b16 %v228
    %v265 = vunpack.c.l.b16 %v229
    %v266 = vunpack.c.l.b16 %v230
    %v267 = vunpack.c.l.b16 %v231
    %v268 = vunpack.c.l.b16 %v232
    %v269 = vunpack.c.l.b16 %v233
    %v270 = vunpack.c.l.b16 %v234
    %v271 = vunpack.c.l.b16 %v235
    %v272 = vunpack.c.l.b16 %v236
    %v273 = vunpack.c.l.b16 %v237
    %v274 = vunpack.c.l.b16 %v238
    %v275 = vunpack.c.l.b16 %v239
    %v276 = vpack.c.b16 %v261, %v260
    %v277 = vpack.c.b16 %v263, %v262
    %v278 = vpack.c.b16 %v265, %v264
    %v279 = vpack.c.b16 %v267, %v266
    %v280 = vpack.c.b16 %v269, %v268
    %v281 = vpack.c.b16 %v271, %v270
    %v282 = vpack.c.b16 %v273, %v272
    %v283 = vpack.c.b16 %v275, %v274
    %292 = vmatpush.bf16.msra.mxu0 %v283
    %293 = vmatpush.bf16.msra.mxu0 %v282
    %294 = vmatpush.bf16.msra.mxu0 %v281
    %295 = vmatpush.bf16.msra.mxu0 %v280
    %296 = vmatpush.bf16.msra.mxu0 %v279
    %297 = vmatpush.bf16.msra.mxu0 %v278
    %298 = vmatpush.bf16.msra.mxu0 %v277
    %299 = vmatpush.bf16.msra.mxu0 %v276
    %300 = vmatmul.bf16.gmra.mxu0 %v223
    %v301 = vpop.f32.mrf.mxu0
    %v302 = vadd.f32 %v242, %v301
    %v303 = vpop.f32.mrf.mxu0
    %304 = vdwg.mxu0
    %v305 = vtanh.pop %v302
    %v306 = vpack.c.bf16 %v305, %v305
    %v307 = vld [vmem:[%s8] sm:$0xff]
    %v308 = vld [vmem:[%s8 + $0x8] sm:$0xff]
    %v309 = vld [vmem:[%s8 + $0x10] sm:$0xff]
    %v310 = vld [vmem:[%s8 + $0x18] sm:$0xff]
    %v311 = vld [vmem:[%s8 + $0x20] sm:$0xff]
    %v312 = vld [vmem:[%s8 + $0x28] sm:$0xff]
    %v313 = vld [vmem:[%s8 + $0x30] sm:$0xff]
    %v314 = vld [vmem:[%s8 + $0x38] sm:$0xff]
    %v315 = vld [vmem:[%s8 + $0x40] sm:$0xff]
    %v316 = vld [vmem:[%s8 + $0x48] sm:$0xff]
    %v317 = vld [vmem:[%s8 + $0x50] sm:$0xff]
    %v318 = vld [vmem:[%s8 + $0x58] sm:$0xff]
    %v319 = vld [vmem:[%s8 + $0x60] sm:$0xff]
    %v320 = vld [vmem:[%s8 + $0x68] sm:$0xff]
    %v321 = vld [vmem:[%s8 + $0x70] sm:$0xff]
    %v322 = vld [vmem:[%s8 + $0x78] sm:$0xff]
    %v323 = vld [vmem:[%s9] sm:$0x3]
    %v325 = vperm.slane %v323, 0
    %v326 = vperm.slane %v323, 1
    %v345 = vunpack.c.l.b16 %v307
    %v346 = vunpack.c.h.b16 %v307
    %v347 = vunpack.c.l.b16 %v308
    %v348 = vunpack.c.h.b16 %v308
    %v349 = vunpack.c.l.b16 %v309
    %v350 = vunpack.c.h.b16 %v309
    %v351 = vunpack.c.l.b16 %v310
    %v352 = vunpack.c.h.b16 %v310
    %v353 = vunpack.c.l.b16 %v311
    %v354 = vunpack.c.h.b16 %v311
    %v355 = vunpack.c.l.b16 %v312
    %v356 = vunpack.c.h.b16 %v312
    %v357 = vunpack.c.l.b16 %v313
    %v358 = vunpack.c.h.b16 %v313
    %v359 = vunpack.c.l.b16 %v314
    %v360 = vunpack.c.h.b16 %v314
    %v361 = vunpack.c.l.b16 %v315
    %v362 = vunpack.c.h.b16 %v315
    %v363 = vunpack.c.l.b16 %v316
    %v364 = vunpack.c.h.b16 %v316
    %v365 = vunpack.c.l.b16 %v317
    %v366 = vunpack.c.h.b16 %v317
    %v367 = vunpack.c.l.b16 %v318
    %v368 = vunpack.c.h.b16 %v318
    %v369 = vunpack.c.l.b16 %v319
    %v370 = vunpack.c.h.b16 %v319
    %v371 = vunpack.c.l.b16 %v320
    %v372 = vunpack.c.h.b16 %v320
    %v373 = vunpack.c.l.b16 %v321
    %v374 = vunpack.c.h.b16 %v321
    %v375 = vunpack.c.l.b16 %v322
    %v376 = vunpack.c.h.b16 %v322
    %v377 = vpack.c.b16 %v347, %v345
    %v378 = vpack.c.b16 %v348, %v346
    %v379 = vpack.c.b16 %v351, %v349
    %v380 = vpack.c.b16 %v352, %v350
    %v381 = vpack.c.b16 %v355, %v353
    %v382 = vpack.c.b16 %v356, %v354
    %v383 = vpack.c.b16 %v359, %v357
    %v384 = vpack.c.b16 %v360, %v358
    %v385 = vpack.c.b16 %v363, %v361
    %v386 = vpack.c.b16 %v364, %v362
    %v387 = vpack.c.b16 %v367, %v365
    %v388 = vpack.c.b16 %v368, %v366
    %v389 = vpack.c.b16 %v371, %v369
    %v390 = vpack.c.b16 %v372, %v370
    %v391 = vpack.c.b16 %v375, %v373
    %v392 = vpack.c.b16 %v376, %v374
    %409 = vmatpush.bf16.msra.mxu0 %v391
    %410 = vmatpush.bf16.msra.mxu0 %v389
    %411 = vmatpush.bf16.msra.mxu0 %v387
    %412 = vmatpush.bf16.msra.mxu0 %v385
    %413 = vmatpush.bf16.msra.mxu0 %v383
    %414 = vmatpush.bf16.msra.mxu0 %v381
    %415 = vmatpush.bf16.msra.mxu0 %v379
    %416 = vmatpush.bf16.msra.mxu0 %v377
    %417 = vmatmul.bf16.gmra.mxu0 %v306
    %v418 = vpop.f32.mrf.mxu0
    %v419 = vadd.f32 %v325, %v418
    %v420 = vpop.f32.mrf.mxu0
    %421 = vdwg.mxu0
    %422 = vmatpush.bf16.msra.mxu0 %v392
    %423 = vmatpush.bf16.msra.mxu0 %v390
    %424 = vmatpush.bf16.msra.mxu0 %v388
    %425 = vmatpush.bf16.msra.mxu0 %v386
    %426 = vmatpush.bf16.msra.mxu0 %v384
    %427 = vmatpush.bf16.msra.mxu0 %v382
    %428 = vmatpush.bf16.msra.mxu0 %v380
    %429 = vmatpush.bf16.msra.mxu0 %v378
    %430 = vmatmul.bf16.gmra.mxu0 %v306
    %v431 = vpop.f32.mrf.mxu0
    %v432 = vadd.f32 %v326, %v431
    %v433 = vpop.f32.mrf.mxu0
    %434 = vdwg.mxu0
    %435 = vst [vmem:[%s17] sm:$0xff] %v419
    %436 = vst [vmem:[%s18] sm:$0xff] %v432
    %v437 = vmul.f32 %v432, 0.5
    %v438 = vmul.f32 %v437, 1.442695
    %v439 = vpow.pop %v438
    %v440 = vld [vmem:[%s1] sm:$0xff]
    %v441 = vmul.f32 %v440, %v439
    %v442 = vadd.f32 %v419, %v441
    %v443 = vpack.c.bf16 %v442, %v442
    %v444 = vld [vmem:[%s10] sm:$0xf]
    %v445 = vld [vmem:[%s10 + $0x4] sm:$0xf]
    %v446 = vld [vmem:[%s10 + $0x8] sm:$0xf]
    %v447 = vld [vmem:[%s10 + $0xc] sm:$0xf]
    %v448 = vld [vmem:[%s10 + $0x10] sm:$0xf]
    %v449 = vld [vmem:[%s10 + $0x14] sm:$0xf]
    %v450 = vld [vmem:[%s10 + $0x18] sm:$0xf]
    %v451 = vld [vmem:[%s10 + $0x1c] sm:$0xf]
    %v452 = vld [vmem:[%s10 + $0x20] sm:$0xf]
    %v453 = vld [vmem:[%s10 + $0x24] sm:$0xf]
    %v454 = vld [vmem:[%s10 + $0x28] sm:$0xf]
    %v455 = vld [vmem:[%s10 + $0x2c] sm:$0xf]
    %v456 = vld [vmem:[%s10 + $0x30] sm:$0xf]
    %v457 = vld [vmem:[%s10 + $0x34] sm:$0xf]
    %v458 = vld [vmem:[%s10 + $0x38] sm:$0xf]
    %v459 = vld [vmem:[%s10 + $0x3c] sm:$0xf]
    %v460 = vld [vmem:[%s11] sm:$0x1]
    %v462 = vperm.slane %v460, 0
    %v480 = vunpack.c.l.b16 %v444
    %v481 = vunpack.c.l.b16 %v445
    %v482 = vunpack.c.l.b16 %v446
    %v483 = vunpack.c.l.b16 %v447
    %v484 = vunpack.c.l.b16 %v448
    %v485 = vunpack.c.l.b16 %v449
    %v486 = vunpack.c.l.b16 %v450
    %v487 = vunpack.c.l.b16 %v451
    %v488 = vunpack.c.l.b16 %v452
    %v489 = vunpack.c.l.b16 %v453
    %v490 = vunpack.c.l.b16 %v454
    %v491 = vunpack.c.l.b16 %v455
    %v492 = vunpack.c.l.b16 %v456
    %v493 = vunpack.c.l.b16 %v457
    %v494 = vunpack.c.l.b16 %v458
    %v495 = vunpack.c.l.b16 %v459
    %v496 = vpack.c.b16 %v481, %v480
    %v497 = vpack.c.b16 %v483, %v482
    %v498 = vpack.c.b16 %v485, %v484
    %v499 = vpack.c.b16 %v487, %v486
    %v500 = vpack.c.b16 %v489, %v488
    %v501 = vpack.c.b16 %v491, %v490
    %v502 = vpack.c.b16 %v493, %v492
    %v503 = vpack.c.b16 %v495, %v494
    %512 = vmatpush.bf16.msra.mxu0 %v503
    %513 = vmatpush.bf16.msra.mxu0 %v502
    %514 = vmatpush.bf16.msra.mxu0 %v501
    %515 = vmatpush.bf16.msra.mxu0 %v500
    %516 = vmatpush.bf16.msra.mxu0 %v499
    %517 = vmatpush.bf16.msra.mxu0 %v498
    %518 = vmatpush.bf16.msra.mxu0 %v497
    %519 = vmatpush.bf16.msra.mxu0 %v496
    %520 = vmatmul.bf16.gmra.mxu0 %v443
    %v521 = vpop.f32.mrf.mxu0
    %v522 = vadd.f32 %v462, %v521
    %v523 = vpop.f32.mrf.mxu0
    %524 = vdwg.mxu0
    %v525 = vtanh.pop %v522
    %v526 = vpack.c.bf16 %v525, %v525
    %v527 = vld [vmem:[%s12] sm:$0xf]
    %v528 = vld [vmem:[%s12 + $0x4] sm:$0xf]
    %v529 = vld [vmem:[%s12 + $0x8] sm:$0xf]
    %v530 = vld [vmem:[%s12 + $0xc] sm:$0xf]
    %v531 = vld [vmem:[%s12 + $0x10] sm:$0xf]
    %v532 = vld [vmem:[%s12 + $0x14] sm:$0xf]
    %v533 = vld [vmem:[%s12 + $0x18] sm:$0xf]
    %v534 = vld [vmem:[%s12 + $0x1c] sm:$0xf]
    %v535 = vld [vmem:[%s12 + $0x20] sm:$0xf]
    %v536 = vld [vmem:[%s12 + $0x24] sm:$0xf]
    %v537 = vld [vmem:[%s12 + $0x28] sm:$0xf]
    %v538 = vld [vmem:[%s12 + $0x2c] sm:$0xf]
    %v539 = vld [vmem:[%s12 + $0x30] sm:$0xf]
    %v540 = vld [vmem:[%s12 + $0x34] sm:$0xf]
    %v541 = vld [vmem:[%s12 + $0x38] sm:$0xf]
    %v542 = vld [vmem:[%s12 + $0x3c] sm:$0xf]
    %v543 = vld [vmem:[%s13] sm:$0x1]
    %v545 = vperm.slane %v543, 0
    %v563 = vunpack.c.l.b16 %v527
    %v564 = vunpack.c.l.b16 %v528
    %v565 = vunpack.c.l.b16 %v529
    %v566 = vunpack.c.l.b16 %v530
    %v567 = vunpack.c.l.b16 %v531
    %v568 = vunpack.c.l.b16 %v532
    %v569 = vunpack.c.l.b16 %v533
    %v570 = vunpack.c.l.b16 %v534
    %v571 = vunpack.c.l.b16 %v535
    %v572 = vunpack.c.l.b16 %v536
    %v573 = vunpack.c.l.b16 %v537
    %v574 = vunpack.c.l.b16 %v538
    %v575 = vunpack.c.l.b16 %v539
    %v576 = vunpack.c.l.b16 %v540
    %v577 = vunpack.c.l.b16 %v541
    %v578 = vunpack.c.l.b16 %v542
    %v579 = vpack.c.b16 %v564, %v563
    %v580 = vpack.c.b16 %v566, %v565
    %v581 = vpack.c.b16 %v568, %v567
    %v582 = vpack.c.b16 %v570, %v569
    %v583 = vpack.c.b16 %v572, %v571
    %v584 = vpack.c.b16 %v574, %v573
    %v585 = vpack.c.b16 %v576, %v575
    %v586 = vpack.c.b16 %v578, %v577
    %595 = vmatpush.bf16.msra.mxu0 %v586
    %596 = vmatpush.bf16.msra.mxu0 %v585
    %597 = vmatpush.bf16.msra.mxu0 %v584
    %598 = vmatpush.bf16.msra.mxu0 %v583
    %599 = vmatpush.bf16.msra.mxu0 %v582
    %600 = vmatpush.bf16.msra.mxu0 %v581
    %601 = vmatpush.bf16.msra.mxu0 %v580
    %602 = vmatpush.bf16.msra.mxu0 %v579
    %603 = vmatmul.bf16.gmra.mxu0 %v526
    %v604 = vpop.f32.mrf.mxu0
    %v605 = vadd.f32 %v545, %v604
    %v606 = vpop.f32.mrf.mxu0
    %607 = vdwg.mxu0
    %v608 = vtanh.pop %v605
    %v609 = vpack.c.bf16 %v608, %v608
    %v610 = vld [vmem:[%s14] sm:$0xf]
    %v611 = vld [vmem:[%s14 + $0x4] sm:$0xf]
    %v612 = vld [vmem:[%s14 + $0x8] sm:$0xf]
    %v613 = vld [vmem:[%s14 + $0xc] sm:$0xf]
    %v614 = vld [vmem:[%s14 + $0x10] sm:$0xf]
    %v615 = vld [vmem:[%s14 + $0x14] sm:$0xf]
    %v616 = vld [vmem:[%s14 + $0x18] sm:$0xf]
    %v617 = vld [vmem:[%s14 + $0x1c] sm:$0xf]
    %v618 = vld [vmem:[%s14 + $0x20] sm:$0xf]
    %v619 = vld [vmem:[%s14 + $0x24] sm:$0xf]
    %v620 = vld [vmem:[%s14 + $0x28] sm:$0xf]
    %v621 = vld [vmem:[%s14 + $0x2c] sm:$0xf]
    %v622 = vld [vmem:[%s14 + $0x30] sm:$0xf]
    %v623 = vld [vmem:[%s14 + $0x34] sm:$0xf]
    %v624 = vld [vmem:[%s14 + $0x38] sm:$0xf]
    %v625 = vld [vmem:[%s14 + $0x3c] sm:$0xf]
    %v626 = vld [vmem:[%s15] sm:$0x1]
    %v628 = vperm.slane %v626, 0
    %v646 = vunpack.c.l.b16 %v610
    %v647 = vunpack.c.l.b16 %v611
    %v648 = vunpack.c.l.b16 %v612
    %v649 = vunpack.c.l.b16 %v613
    %v650 = vunpack.c.l.b16 %v614
    %v651 = vunpack.c.l.b16 %v615
    %v652 = vunpack.c.l.b16 %v616
    %v653 = vunpack.c.l.b16 %v617
    %v654 = vunpack.c.l.b16 %v618
    %v655 = vunpack.c.l.b16 %v619
    %v656 = vunpack.c.l.b16 %v620
    %v657 = vunpack.c.l.b16 %v621
    %v658 = vunpack.c.l.b16 %v622
    %v659 = vunpack.c.l.b16 %v623
    %v660 = vunpack.c.l.b16 %v624
    %v661 = vunpack.c.l.b16 %v625
    %v662 = vpack.c.b16 %v647, %v646
    %v663 = vpack.c.b16 %v649, %v648
    %v664 = vpack.c.b16 %v651, %v650
    %v665 = vpack.c.b16 %v653, %v652
    %v666 = vpack.c.b16 %v655, %v654
    %v667 = vpack.c.b16 %v657, %v656
    %v668 = vpack.c.b16 %v659, %v658
    %v669 = vpack.c.b16 %v661, %v660
    %678 = vmatpush.bf16.msra.mxu0 %v669
    %679 = vmatpush.bf16.msra.mxu0 %v668
    %680 = vmatpush.bf16.msra.mxu0 %v667
    %681 = vmatpush.bf16.msra.mxu0 %v666
    %682 = vmatpush.bf16.msra.mxu0 %v665
    %683 = vmatpush.bf16.msra.mxu0 %v664
    %684 = vmatpush.bf16.msra.mxu0 %v663
    %685 = vmatpush.bf16.msra.mxu0 %v662
    %686 = vmatmul.bf16.gmra.mxu0 %v609
    %v687 = vpop.f32.mrf.mxu0
    %v688 = vadd.f32 %v628, %v687
    %v689 = vpop.f32.mrf.mxu0
    %690 = vdwg.mxu0
    %v691 = vpack.c.bf16 %v688, %v688
    %692 = vst [vmem:[#allocation2] sm:$0xf] %v691
    // Predicated region
    $region66: #{vae_forward.1} parent=1 // pred_check
      _
    $region67: #{vae_forward.1} parent=1 // pred_check_branch
      %694 = sbr.rel (0) target = $region69
    $region68: #{vae_forward.1} parent=1 // pred_region
      %696 = vsyncadd [#allocation3], 0
      %s698 = sshll.u32 [#allocation2], 4
      %s699 = int_to_ptr.vmem [resolvable:$true] %s698
      %s700 = sshll.u32 %s16, 4
      %s701 = int_to_ptr.hbm [resolvable:$true] %s700
      %703 = dma.vmem_to_hbm [thread:$0]  %s699, 64, %s701, [#allocation3]
    $region69: #{vae_forward.1} parent=1 // pred_fallthru
      _
    // Predicated region
    $region70: #{vae_forward.1} parent=1 // pred_check
      _
    $region71: #{vae_forward.1} parent=1 // pred_check_branch
      %705 = sbr.rel (0) target = $region73
    $region72: #{vae_forward.1} parent=1 // pred_region
      _
    $region73: #{vae_forward.1} parent=1 // pred_fallthru
      _
    // Predicated region
    $region74: #{vae_forward.1} parent=1 // pred_check
      _
    $region75: #{vae_forward.1} parent=1 // pred_check_branch
      %707 = sbr.rel (0) target = $region77
    $region76: #{vae_forward.1} parent=1 // pred_region
      _
    $region77: #{vae_forward.1} parent=1 // pred_fallthru
      _
    // Predicated region
    $region78: #{vae_forward.1} parent=1 // pred_check
      _
    $region79: #{vae_forward.1} parent=1 // pred_check_branch
      %709 = sbr.rel (0) target = $region81
    $region80: #{vae_forward.1} parent=1 // pred_region
      %711 = dma.done [#allocation3], 64
    $region81: #{vae_forward.1} parent=1 // pred_fallthru
      _
    // Predicated region
    $region82: #{vae_forward.1} parent=1 // pred_check
      _
    $region83: #{vae_forward.1} parent=1 // pred_check_branch
      %713 = sbr.rel (0) target = $region85
    $region84: #{vae_forward.1} parent=1 // pred_region
      _
    $region85: #{vae_forward.1} parent=1 // pred_fallthru
      _
    // Predicated region
    $region86: #{vae_forward.1} parent=1 // pred_check
      _
    $region87: #{vae_forward.1} parent=1 // pred_check_branch
      %715 = sbr.rel (0) target = $region89
    $region88: #{vae_forward.1} parent=1 // pred_region
      _
    $region89: #{vae_forward.1} parent=1 // pred_fallthru
      _
    %716 = vsyncpa [#allocation3], 1

</llo_original>
